<compile_context>
chip_gen: v5e
topology: v5e:2x2
jax: 0.10.0
libtpu: 0.0.40
codegen_flags: <defaults>
</compile_context>

<pallas_src>
import math

import jax
import jax.numpy as jnp
from jax import lax
from jax.experimental import pallas as pl
from jax.experimental.pallas import tpu as pltpu

CROSS_HEADS = 4
SELF_HEADS = 4
VMEM_LIMIT = 48 * 1024 * 1024   # safe on v5e/v6e (128 MiB) and v7x (64 MiB physical)


# ---------------------------------------------------------------------------
# In-kernel math helpers (f32)
# ---------------------------------------------------------------------------
def _layernorm(x, w, b, eps=1e-5):
    mu = jnp.mean(x, axis=-1, keepdims=True)
    xc = x - mu
    var = jnp.mean(xc * xc, axis=-1, keepdims=True)
    return xc * lax.rsqrt(var + eps) * w + b


def _erf(x):
    # Abramowitz & Stegun 7.1.26 rational approximation (max abs err ~1.5e-7):
    # float32-accurate exact (erf-based) GELU matching PyTorch F.gelu(approximate='none').
    p = 0.3275911
    a1, a2, a3, a4, a5 = 0.254829592, -0.284496736, 1.421413741, -1.453152027, 1.061405429
    s = jnp.where(x >= 0.0, 1.0, -1.0)
    z = jnp.abs(x)
    t = 1.0 / (1.0 + p * z)
    poly = ((((a5 * t + a4) * t + a3) * t + a2) * t + a1) * t
    return s * (1.0 - poly * jnp.exp(-z * z))


def _gelu_exact(x):
    return 0.5 * x * (1.0 + _erf(x * (1.0 / math.sqrt(2.0))))


def _multi_head_attention(q3, k3, v3, wo, bo, num_heads):
    """q3: (B,N,D) f32, k3/v3: (B,S,D) f32, wo: (D,D) bf16 (rows = input feats), bo: (1,D) f32.
    Returns (B*N, D) f32 (after output projection, before any residual)."""
    B, N, D = q3.shape
    hd = D // num_heads
    scale = 1.0 / math.sqrt(hd)
    acc = None
    for h in range(num_heads):                              # static unroll over heads
        sl = slice(h * hd, (h + 1) * hd)
        qh = q3[:, :, sl].astype(jnp.bfloat16)
        kh = k3[:, :, sl].astype(jnp.bfloat16)
        vh = v3[:, :, sl].astype(jnp.bfloat16)
        s = jnp.einsum('bnh,bsh->bns', qh, kh,
                       preferred_element_type=jnp.float32) * scale       # (B,N,S)
        s = s - jnp.max(s, axis=-1, keepdims=True)
        e = jnp.exp(s)
        pr = e * pl.reciprocal(jnp.sum(e, axis=-1, keepdims=True), approx=True)
        oh = jnp.einsum('bns,bsh->bnh', pr.astype(jnp.bfloat16), vh,
                        preferred_element_type=jnp.float32)              # (B,N,hd)
        part = jnp.dot(oh.reshape(B * N, hd).astype(jnp.bfloat16), wo[sl, :],
                       preferred_element_type=jnp.float32)               # (B*N,D)
        acc = part if acc is None else acc + part
    return acc + bo


def _feed_forward(x2, ln_w, ln_b, wf1, bf1, wf2, bf2):
    """x2: (M,D) f32.  LayerNorm -> Linear(D,8D) -> GEGLU -> Linear(4D,D)."""
    hn = _layernorm(x2, ln_w, ln_b).astype(jnp.bfloat16)
    u = jnp.dot(hn, wf1, preferred_element_type=jnp.float32) + bf1
    half = u.shape[-1] // 2
    gl = u[:, :half] * _gelu_exact(u[:, half:])
    return jnp.dot(gl.astype(jnp.bfloat16), wf2, preferred_element_type=jnp.float32) + bf2


# ---------------------------------------------------------------------------
# visual_net kernel (transposed form, batch-mean folded into the grid)
#   per batch b:  y_b = W2 @ relu(W1 @ visual[b] + b1) + b2   -> (L, D), lane-dense in D
# ---------------------------------------------------------------------------
def _visual_net_kernel(x_ref, w1_ref, b1_ref, w2_ref, b2_ref, o_ref):
    b = pl.program_id(0)
    nb = pl.num_programs(0)
    x = x_ref[0].astype(jnp.bfloat16)                                         # (256, D)
    h = jnp.dot(w1_ref[...], x, preferred_element_type=jnp.float32) + b1_ref[...]
    h = jnp.maximum(h, 0.0)                                                   # (32, D)
    y = jnp.dot(w2_ref[...], h.astype(jnp.bfloat16),
                preferred_element_type=jnp.float32) + b2_ref[...]             # (L, D)

    @pl.when(b == 0)
    def _():
        o_ref[...] = jnp.zeros_like(o_ref)

    o_ref[...] += y

    @pl.when(b == nb - 1)
    def _():
        o_ref[...] = o_ref[...] / nb


def visual_net_mean(visual, p):
    """visual: (B, 256, D).  Returns visual_prompt_mean: (prompt_len, D) -- no HBM transposes."""
    B, F, D = visual.shape
    L = p["w2"].shape[0]
    weights = [p["w1"], p["b1"], p["w2"], p["b2"]]
    return pl.pallas_call(
        _visual_net_kernel,
        out_shape=jax.ShapeDtypeStruct((L, D), jnp.float32),
        grid=(B,),
        in_specs=[pl.BlockSpec((1, F, D), lambda b: (b, 0, 0))]
        + [pl.BlockSpec(w.shape, lambda b: (0, 0)) for w in weights],
        out_specs=pl.BlockSpec((L, D), lambda b: (0, 0)),      # accumulator across the grid
        compiler_params=pltpu.CompilerParams(dimension_semantics=("arbitrary",)),
    )(visual, *weights)


# ---------------------------------------------------------------------------
# Cross-attention encoder kernel (single invocation, whole batch folded into M)
#   PreNorm(q, ctx) -> MHA (no residual) -> FF + residual
# ---------------------------------------------------------------------------
def _make_cross_attn_ff_kernel(num_heads):
    def kernel(vp_ref, ctx_ref,
               lnq_w, lnq_b, lnc_w, lnc_b,
               wq, bq, wk, bk, wv, bv, wo, bo,
               lnf_w, lnf_b, wf1, bf1, wf2, bf2,
               o_ref):
        B, S, DKV = ctx_ref.shape
        L, D = vp_ref.shape
        # Batch-invariant query path: LayerNorm + Q projection computed exactly once.
        qn = _layernorm(vp_ref[...].astype(jnp.float32), lnq_w[...], lnq_b[...])
        q = jnp.dot(qn.astype(jnp.bfloat16), wq[...],
                    preferred_element_type=jnp.float32) + bq[...]             # (L, D)
        # K/V path: fold batch into the matmul M dimension.
        ctx = ctx_ref[...].astype(jnp.float32).reshape(B * S, DKV)
        kvn = _layernorm(ctx, lnc_w[...], lnc_b[...]).astype(jnp.bfloat16)
        k = (jnp.dot(kvn, wk[...], preferred_element_type=jnp.float32)
             + bk[...]).reshape(B, S, D)
        v = (jnp.dot(kvn, wv[...], preferred_element_type=jnp.float32)
             + bv[...]).reshape(B, S, D)
        qb = jnp.broadcast_to(q[None], (B, L, D))        # hoisted once, outside the head loop
        attn = _multi_head_attention(qb, k, v, wo[...], bo[...], num_heads)   # (B*L, D)
        # CrossAttention: no residual on the attention output; FF has a residual.
        y = _feed_forward(attn, lnf_w[...], lnf_b[...], wf1[...], bf1[...], wf2[...], bf2[...])
        o_ref[...] = (y + attn).reshape(B, L, D).astype(o_ref.dtype)
    return kernel


def cross_attn_ff(vp_mean, text_emb, p, *, num_heads):
    B, S, _ = text_emb.shape
    L, D = vp_mean.shape
    args = (vp_mean, text_emb,
            p["ln_q_w"], p["ln_q_b"], p["ln_kv_w"], p["ln_kv_b"],
            p["wq"], p["bq"], p["wk"], p["bk"], p["wv"], p["bv"], p["wo"], p["bo"],
            p["ln_ff_w"], p["ln_ff_b"], p["w_ff1"], p["b_ff1"], p["w_ff2"], p["b_ff2"])
    return pl.pallas_call(
        _make_cross_attn_ff_kernel(num_heads),
        out_shape=jax.ShapeDtypeStruct((B, L, D), jnp.float32),
        compiler_params=pltpu.CompilerParams(vmem_limit_bytes=VMEM_LIMIT),
    )(*args)


# ---------------------------------------------------------------------------
# Fused self-attention transformer: ONE pallas_call, grid over depth.
# Per-layer weights are stacked along a leading depth axis and streamed per step;
# the (B, N, D) activations stay resident in the output VMEM block across the grid.
# ---------------------------------------------------------------------------
def _make_self_attn_ff_kernel(num_heads):
    def kernel(x_ref,
               ln_w, ln_b, wq, bq, wk, bk, wv, bv, wo, bo,
               lnf_w, lnf_b, wf1, bf1, wf2, bf2,
               o_ref):
        layer = pl.program_id(0)
        B, N, D = o_ref.shape

        @pl.when(layer == 0)
        def _():
            o_ref[...] = x_ref[...].astype(o_ref.dtype)

        x3 = o_ref[...].astype(jnp.float32)
        x2 = x3.reshape(B * N, D)
        # Single shared PreNorm (x_kv is None -> k/v are the normalized queries).
        xn = _layernorm(x2, ln_w[0], ln_b[0]).astype(jnp.bfloat16)
        q = (jnp.dot(xn, wq[0], preferred_element_type=jnp.float32) + bq[0]).reshape(B, N, D)
        k = (jnp.dot(xn, wk[0], preferred_element_type=jnp.float32) + bk[0]).reshape(B, N, D)
        v = (jnp.dot(xn, wv[0], preferred_element_type=jnp.float32) + bv[0]).reshape(B, N, D)
        attn = _multi_head_attention(q, k, v, wo[0], bo[0], num_heads) + x2   # attn residual
        y = _feed_forward(attn, lnf_w[0], lnf_b[0], wf1[0], bf1[0], wf2[0], bf2[0])
        o_ref[...] = (y + attn).reshape(B, N, D).astype(o_ref.dtype)
    return kernel


_SELF_WEIGHT_NAMES = ["ln_w", "ln_b", "wq", "bq", "wk", "bk", "wv", "bv", "wo", "bo",
                      "ln_ff_w", "ln_ff_b", "w_ff1", "b_ff1", "w_ff2", "b_ff2"]


def self_attn_stack(x, stacked, *, num_heads):
    B, N, D = x.shape
    depth = stacked["wq"].shape[0]
    weights = [stacked[n] for n in _SELF_WEIGHT_NAMES]
    w_specs = [pl.BlockSpec((1,) + tuple(w.shape[1:]), lambda l: (l, 0, 0)) for w in weights]
    return pl.pallas_call(
        _make_self_attn_ff_kernel(num_heads),
        out_shape=jax.ShapeDtypeStruct((B, N, D), jnp.float32),
        grid=(depth,),
        in_specs=[pl.BlockSpec((B, N, D), lambda l: (0, 0, 0))] + w_specs,
        out_specs=pl.BlockSpec((B, N, D), lambda l: (0, 0, 0)),   # resident across layers
        compiler_params=pltpu.CompilerParams(
            dimension_semantics=("arbitrary",),
            vmem_limit_bytes=VMEM_LIMIT),
    )(x, *weights)


# ---------------------------------------------------------------------------
# Parameter init (deterministic, synthetic) -- weights pre-transposed + bf16
# ---------------------------------------------------------------------------
def _dense_t(key, in_dim, out_dim, scale=0.02):
    """Returns (W^T as bf16 of shape (in_dim, out_dim), bias row (1, out_dim) f32)."""
    kw, kb = jax.random.split(key)
    w_t = (scale * jax.random.normal(kw, (in_dim, out_dim), jnp.float32)).astype(jnp.bfloat16)
    b = scale * jax.random.normal(kb, (1, out_dim), jnp.float32)
    return w_t, b


def _attn_ff_params(key, d, dkv, mult=4):
    keys = jax.random.split(key, 6)
    wq, bq = _dense_t(keys[0], d, d)
    wk, bk = _dense_t(keys[1], dkv, d)
    wv, bv = _dense_t(keys[2], dkv, d)
    wo, bo = _dense_t(keys[3], d, d)
    w_ff1, b_ff1 = _dense_t(keys[4], d, d * mult * 2)
    w_ff2, b_ff2 = _dense_t(keys[5], d * mult, d)
    return dict(
        ln_q_w=jnp.ones((1, d), jnp.float32), ln_q_b=jnp.zeros((1, d), jnp.float32),
        ln_kv_w=jnp.ones((1, dkv), jnp.float32), ln_kv_b=jnp.zeros((1, dkv), jnp.float32),
        wq=wq, bq=bq, wk=wk, bk=bk, wv=wv, bv=bv, wo=wo, bo=bo,
        ln_ff_w=jnp.ones((1, d), jnp.float32), ln_ff_b=jnp.zeros((1, d), jnp.float32),
        w_ff1=w_ff1, b_ff1=b_ff1, w_ff2=w_ff2, b_ff2=b_ff2,
    )


def _self_layer_params(key, d, mult=4):
    p = _attn_ff_params(key, d, d, mult)
    return dict(
        ln_w=p["ln_q_w"], ln_b=p["ln_q_b"],      # shared PreNorm for q and k/v
        wq=p["wq"], bq=p["bq"], wk=p["wk"], bk=p["bk"], wv=p["wv"], bv=p["bv"],
        wo=p["wo"], bo=p["bo"],
        ln_ff_w=p["ln_ff_w"], ln_ff_b=p["ln_ff_b"],
        w_ff1=p["w_ff1"], b_ff1=p["b_ff1"], w_ff2=p["w_ff2"], b_ff2=p["b_ff2"],
    )


def init_params(key, *, prompt_len, prompt_dim, textemb_dim, depth, mult=4):
    k_vis, k_enc, *k_layers = jax.random.split(key, 2 + depth)
    kw1, kb1, kw2, kb2 = jax.random.split(k_vis, 4)
    visual_net = dict(
        w1=(0.02 * jax.random.normal(kw1, (32, 256), jnp.float32)).astype(jnp.bfloat16),
        b1=0.02 * jax.random.normal(kb1, (32, 1), jnp.float32),
        w2=(0.02 * jax.random.normal(kw2, (prompt_len, 32), jnp.float32)).astype(jnp.bfloat16),
        b2=0.02 * jax.random.normal(kb2, (prompt_len, 1), jnp.float32),
    )
    encoder = _attn_ff_params(k_enc, prompt_dim, textemb_dim, mult)
    layers = None
    if depth > 0:
        per_layer = [_self_layer_params(kl, prompt_dim, mult) for kl in k_layers]
        layers = jax.tree_util.tree_map(lambda *xs: jnp.stack(xs, axis=0), *per_layer)
    return dict(visual_net=visual_net, encoder=encoder, layers=layers)


# ---------------------------------------------------------------------------
# Full forward
# ---------------------------------------------------------------------------
def prompt_translator_forward(params, text_emb, visual):
    # visual_net (transposed form) + batch mean  -> (prompt_len, prompt_dim)
    vp_mean = visual_net_mean(visual, params["visual_net"])
    # CrossAttention encoder: attn (no residual) then FF + residual; q is batch-invariant.
    x = cross_attn_ff(vp_mean, text_emb, params["encoder"], num_heads=CROSS_HEADS)
    # SelfAttention transformer: all depth layers fused into one pallas_call.
    if params["layers"] is not None:
        x = self_attn_stack(x, params["layers"], num_heads=SELF_HEADS)
    return x


# TODO(synk): key_padding_mask is always None in this forward (mask=None); the masked
# attention path is not implemented.  Dropout has p=0.0 and is an identity at inference.

if __name__ == "__main__":
    B = 2
    SEQ = 8
    PROMPT_LEN = 8
    PROMPT_DIM = 64     # small stand-in for 512; divisible by 4 heads
    TEXT_DIM = 64       # small stand-in for textemb_dim=512
    DEPTH = 2

    key = jax.random.PRNGKey(0)
    k_params, k_text, k_vis = jax.random.split(key, 3)
    params = init_params(k_params, prompt_len=PROMPT_LEN, prompt_dim=PROMPT_DIM,
                         textemb_dim=TEXT_DIM, depth=DEPTH)

    text_emb = jax.random.normal(k_text, (B, SEQ, TEXT_DIM), jnp.float32)
    visual = jax.random.normal(k_vis, (B, 256, PROMPT_DIM), jnp.float32)

    out = prompt_translator_forward(params, text_emb, visual)
    out = jax.block_until_ready(out)
    assert out.shape == (B, PROMPT_LEN, PROMPT_DIM)
    assert bool(jnp.all(jnp.isfinite(out)))
    print("KERNEL_OK")
</pallas_src>

<mosaic_0001>
module attributes {stable_mosaic.version = 11 : i64} {
  func.func @_visual_net_kernel(%arg0: i32, %arg1: memref<1x256x64xf32, #tpu.memory_space<vmem>>, %arg2: memref<32x256xbf16, #tpu.memory_space<vmem>>, %arg3: memref<32x1xf32, #tpu.memory_space<vmem>>, %arg4: memref<8x32xbf16, #tpu.memory_space<vmem>>, %arg5: memref<8x1xf32, #tpu.memory_space<vmem>>, %arg6: memref<8x64xf32, #tpu.memory_space<vmem>>) attributes {dimension_semantics = [#tpu.dimension_semantics<arbitrary>], iteration_bounds = array<i64: 2>, scalar_prefetch = 0 : i64, scratch_operands = 0 : i64, tpu.core_type = #tpu.core_type<tc>, window_params = [{transform_indices = @transform_0, window_bounds = array<i64: 1, 256, 64>}, {pipeline_mode = #tpu.pipeline_mode<synchronous>, transform_indices = @transform_1, window_bounds = array<i64: 32, 256>}, {pipeline_mode = #tpu.pipeline_mode<synchronous>, transform_indices = @transform_2, window_bounds = array<i64: 32, 1>}, {pipeline_mode = #tpu.pipeline_mode<synchronous>, transform_indices = @transform_3, window_bounds = array<i64: 8, 32>}, {pipeline_mode = #tpu.pipeline_mode<synchronous>, transform_indices = @transform_4, window_bounds = array<i64: 8, 1>}, {pipeline_mode = #tpu.pipeline_mode<synchronous>, transform_indices = @transform_5, window_bounds = array<i64: 8, 64>}]} {
    %c0 = arith.constant 0 : index
    %c0_0 = arith.constant 0 : index
    %c0_1 = arith.constant 0 : index
    %0 = vector.load %arg1[%c0, %c0_0, %c0_1] : memref<1x256x64xf32, #tpu.memory_space<vmem>>, vector<1x256x64xf32>
    %1 = vector.shape_cast %0 : vector<1x256x64xf32> to vector<256x64xf32>
    %2 = arith.truncf %1 : vector<256x64xf32> to vector<256x64xbf16>
    %c0_2 = arith.constant 0 : index
    %c0_3 = arith.constant 0 : index
    %3 = vector.load %arg2[%c0_2, %c0_3] : memref<32x256xbf16, #tpu.memory_space<vmem>>, vector<32x256xbf16>
    %cst = arith.constant dense<0.000000e+00> : vector<32x64xf32>
    %4 = tpu.matmul %3, %2, %cst {dimension_numbers = #tpu.dot_dimension_numbers<[1], [0], [0], [1], [0, 0, 1, 1], [], []>} : vector<32x256xbf16>, vector<256x64xbf16>, vector<32x64xf32> -> vector<32x64xf32>
    %c0_4 = arith.constant 0 : index
    %c0_5 = arith.constant 0 : index
    %5 = vector.load %arg3[%c0_4, %c0_5] : memref<32x1xf32, #tpu.memory_space<vmem>>, vector<32x1xf32>
    %6 = vector.broadcast %5 : vector<32x1xf32> to vector<32x64xf32>
    %7 = arith.addf %4, %6 : vector<32x64xf32>
    %cst_6 = arith.constant 0.000000e+00 : f32
    %8 = vector.broadcast %cst_6 : f32 to vector<32x64xf32>
    %9 = arith.maximumf %7, %8 : vector<32x64xf32>
    %c0_7 = arith.constant 0 : index
    %c0_8 = arith.constant 0 : index
    %10 = vector.load %arg4[%c0_7, %c0_8] : memref<8x32xbf16, #tpu.memory_space<vmem>>, vector<8x32xbf16>
    %11 = arith.truncf %9 : vector<32x64xf32> to vector<32x64xbf16>
    %cst_9 = arith.constant dense<0.000000e+00> : vector<8x64xf32>
    %12 = tpu.matmul %10, %11, %cst_9 {dimension_numbers = #tpu.dot_dimension_numbers<[1], [0], [0], [1], [0, 0, 1, 1], [], []>} : vector<8x32xbf16>, vector<32x64xbf16>, vector<8x64xf32> -> vector<8x64xf32>
    %c0_10 = arith.constant 0 : index
    %c0_11 = arith.constant 0 : index
    %13 = vector.load %arg5[%c0_10, %c0_11] : memref<8x1xf32, #tpu.memory_space<vmem>>, vector<8x1xf32>
    %14 = vector.broadcast %13 : vector<8x1xf32> to vector<8x64xf32>
    %15 = arith.addf %12, %14 : vector<8x64xf32>
    %c0_i32 = arith.constant 0 : i32
    %16 = arith.cmpi eq, %arg0, %c0_i32 : i32
    %17 = arith.extui %16 : i1 to i32
    %c0_i32_12 = arith.constant 0 : i32
    %18 = arith.cmpi ne, %17, %c0_i32_12 : i32
    scf.if %18 {
      %cst_18 = arith.constant 0.000000e+00 : f32
      %25 = vector.broadcast %cst_18 : f32 to vector<8x64xf32>
      %c0_19 = arith.constant 0 : index
      %c0_20 = arith.constant 0 : index
      %26 = vector.load %arg6[%c0_19, %c0_20] : memref<8x64xf32, #tpu.memory_space<vmem>>, vector<8x64xf32>
      tpu.vector_store %arg6[%c0_19, %c0_20], %25 {strides = array<i32>} : memref<8x64xf32, #tpu.memory_space<vmem>>, vector<8x64xf32>,
    } else {
    }
    %c0_13 = arith.constant 0 : index
    %c0_14 = arith.constant 0 : index
    %19 = vector.load %arg6[%c0_13, %c0_14] : memref<8x64xf32, #tpu.memory_space<vmem>>, vector<8x64xf32>
    %20 = arith.addf %19, %15 : vector<8x64xf32>
    %c0_15 = arith.constant 0 : index
    %c0_16 = arith.constant 0 : index
    %21 = vector.load %arg6[%c0_15, %c0_16] : memref<8x64xf32, #tpu.memory_space<vmem>>, vector<8x64xf32>
    tpu.vector_store %arg6[%c0_15, %c0_16], %20 {strides = array<i32>} : memref<8x64xf32, #tpu.memory_space<vmem>>, vector<8x64xf32>,
    %c1_i32 = arith.constant 1 : i32
    %22 = arith.cmpi eq, %arg0, %c1_i32 : i32
    %23 = arith.extui %22 : i1 to i32
    %c0_i32_17 = arith.constant 0 : i32
    %24 = arith.cmpi ne, %23, %c0_i32_17 : i32
    scf.if %24 {
      %c0_18 = arith.constant 0 : index
      %c0_19 = arith.constant 0 : index
      %25 = vector.load %arg6[%c0_18, %c0_19] : memref<8x64xf32, #tpu.memory_space<vmem>>, vector<8x64xf32>
      %cst_20 = arith.constant 2.000000e+00 : f32
      %26 = vector.broadcast %cst_20 : f32 to vector<8x64xf32>
      %27 = arith.divf %25, %26 : vector<8x64xf32>
      %c0_21 = arith.constant 0 : index
      %c0_22 = arith.constant 0 : index
      %28 = vector.load %arg6[%c0_21, %c0_22] : memref<8x64xf32, #tpu.memory_space<vmem>>, vector<8x64xf32>
      tpu.vector_store %arg6[%c0_21, %c0_22], %27 {strides = array<i32>} : memref<8x64xf32, #tpu.memory_space<vmem>>, vector<8x64xf32>,
    } else {
    }
    return
  }
  func.func @transform_0(%arg0: i32) -> (i32, i32, i32) {
    %c0_i32 = arith.constant 0 : i32
    %c0_i32_0 = arith.constant 0 : i32
    %c0_i32_1 = arith.constant 0 : i32
    return %arg0, %c0_i32, %c0_i32_0 : i32, i32, i32
  }
  func.func @transform_1(%arg0: i32) -> (i32, i32) {
    %c0_i32 = arith.constant 0 : i32
    %c0_i32_0 = arith.constant 0 : i32
    %c0_i32_1 = arith.constant 0 : i32
    return %c0_i32, %c0_i32_0 : i32, i32
  }
  func.func @transform_2(%arg0: i32) -> (i32, i32) {
    %c0_i32 = arith.constant 0 : i32
    %c0_i32_0 = arith.constant 0 : i32
    %c0_i32_1 = arith.constant 0 : i32
    return %c0_i32, %c0_i32_0 : i32, i32
  }
  func.func @transform_3(%arg0: i32) -> (i32, i32) {
    %c0_i32 = arith.constant 0 : i32
    %c0_i32_0 = arith.constant 0 : i32
    %c0_i32_1 = arith.constant 0 : i32
    return %c0_i32, %c0_i32_0 : i32, i32
  }
  func.func @transform_4(%arg0: i32) -> (i32, i32) {
    %c0_i32 = arith.constant 0 : i32
    %c0_i32_0 = arith.constant 0 : i32
    %c0_i32_1 = arith.constant 0 : i32
    return %c0_i32, %c0_i32_0 : i32, i32
  }
  func.func @transform_5(%arg0: i32) -> (i32, i32) {
    %c0_i32 = arith.constant 0 : i32
    %c0_i32_0 = arith.constant 0 : i32
    %c0_i32_1 = arith.constant 0 : i32
    return %c0_i32, %c0_i32_0 : i32, i32
  }
}

</mosaic_0001>

<llo_original>
// kernel: tpu_custom_call.1
$region0: #{tpu_custom_call.1}
  #allocation0 [shape = 'u32[]', space=smem, size = 0x4, offset = 0x4, fixed_abs, tag = 'smem constant byte address 0x4 - core index']
  #allocation1 [shape = 'u32[72,128]{1,0:T(1,128)}', space=vmem, size = 0x9000, scoped, tag = 'internal scratch']
  %s0 = inlined_call_operand.vmem [shape: f32[2,256,64], index: 0, kind: input, shape index: {}]
  %s1 = inlined_call_operand.vmem [shape: bf16[32,256], index: 1, kind: input, shape index: {}]
  %s2 = inlined_call_operand.vmem [shape: f32[32,1], index: 2, kind: input, shape index: {}]
  %s3 = inlined_call_operand.vmem [shape: bf16[8,32], index: 3, kind: input, shape index: {}]
  %s4 = inlined_call_operand.vmem [shape: f32[8,1], index: 4, kind: input, shape index: {}]
  %s5 = inlined_call_operand.hbm [shape: f32[8,64], index: 5, kind: output, shape index: {}]
  %s6 = sld [smem:[#allocation0]]
  $region61: #{tpu_custom_call.1} parent=0
    _
  %s8 = ssub.s32 1, %s6
  %s9 = scalar_select 0, %s8, %s6
  $region1: #{tpu_custom_call.1} parent=0
    #allocation2 [shape = 'u8[4096]{0}', space=vmem, size = 0x1000, scoped, tag = 'output window, operand 0, single buffered']
    #allocation3 [shape = 's32[2]{0}', space=sflag, size = 0x8, scoped, tag = 'scoped memory for tpu_custom_call.1']
    %10 = vsyncpa [#allocation3], 0
    loop: start=0, step=1, limit=4
    $region2: #{tpu_custom_call.1} parent=1 // loop_pre_header
      _
    $region3: #{tpu_custom_call.1} parent=1 // loop_header
      %s12 = sphi 0, %s16
      %p13 = scmp.ge.s32.totalorder %s12, 4
      %s22 = sphi 0, %s24
      %s25 = sphi 0, %s22
      %s26 = sphi 0, %s25
      %s42 = sphi 0, %s26
      %s46 = sphi 0, %s46
      %s48 = sphi 0, %s46
      %s49 = sphi 0, %s48
      %s63 = sphi 0, %s49
      %s67 = sphi 0, %s67
      %s69 = sphi 0, %s67
      %s70 = sphi 0, %s69
      %s84 = sphi 0, %s70
      %s88 = sphi 0, %s88
      %s90 = sphi 0, %s88
      %s91 = sphi 0, %s90
      %s105 = sphi 0, %s91
      %s109 = sphi 0, %s109
      %s111 = sphi 0, %s109
      %s112 = sphi 0, %s111
      %s126 = sphi 0, %s112
      %s130 = sphi 0, %s130
      %s132 = sphi 0, %s130
      %s133 = sphi 0, %s132
      %s147 = sphi 0, %s133
    $region4: #{tpu_custom_call.1} parent=1 // loop_header_branch
      %15 = sbr.rel (%p13) target = $region8
    $region5: #{tpu_custom_call.1} parent=1 // loop_body
      %s17 = ssub.s32 %s12, 1
      %s18 = ssub.s32 %s12, 2
      %s19 = sadd.s32 %s12, 1
      %s20 = ssub.s32 %s12, %s19
      %p21 = scmp.eq.s32.totalorder %s20, 0
      %s23 = sadd.s32 %s22, 1
      %s24 = scalar_select %p21, %s22, %s23
      %p27 = pneg %p21
      %p28 = scmp.eq.s32.totalorder %s12, 1
      %p29 = por %p27, %p28
      %p30 = scmp.ne.s32.totalorder %s22, %s25
      %p31 = scmp.eq.s32.totalorder %s12, 0
      %p32 = por %p30, %p31
      %p33 = scmp.ne.s32.totalorder %s22, %s25
      %p34 = scmp.eq.s32.totalorder %s17, 1
      %p35 = por %p33, %p34
      %p36 = scmp.ne.s32.totalorder %s25, %s26
      %p37 = scmp.eq.s32.totalorder %s17, 0
      %p38 = por %p36, %p37
      %p39 = scmp.ne.s32.totalorder %s25, %s26
      %p40 = scmp.eq.s32.totalorder %s18, 1
      %p41 = por %p39, %p40
      %p43 = scmp.ne.s32.totalorder %s26, %s42
      %p44 = scmp.eq.s32.totalorder %s18, 0
      %p45 = por %p43, %p44
      %s47 = sadd.s32 %s46, 1
      %p50 = scmp.eq.s32.totalorder %s12, 1
      %p51 = scmp.ne.s32.totalorder %s46, %s48
      %p52 = scmp.eq.s32.totalorder %s12, 0
      %p53 = por %p51, %p52
      %p54 = scmp.ne.s32.totalorder %s46, %s48
      %p55 = scmp.eq.s32.totalorder %s17, 1
      %p56 = por %p54, %p55
      %p57 = scmp.ne.s32.totalorder %s48, %s49
      %p58 = scmp.eq.s32.totalorder %s17, 0
      %p59 = por %p57, %p58
      %p60 = scmp.ne.s32.totalorder %s48, %s49
      %p61 = scmp.eq.s32.totalorder %s18, 1
      %p62 = por %p60, %p61
      %p64 = scmp.ne.s32.totalorder %s49, %s63
      %p65 = scmp.eq.s32.totalorder %s18, 0
      %p66 = por %p64, %p65
      %s68 = sadd.s32 %s67, 1
      %p71 = scmp.eq.s32.totalorder %s12, 1
      %p72 = scmp.ne.s32.totalorder %s67, %s69
      %p73 = scmp.eq.s32.totalorder %s12, 0
      %p74 = por %p72, %p73
      %p75 = scmp.ne.s32.totalorder %s67, %s69
      %p76 = scmp.eq.s32.totalorder %s17, 1
      %p77 = por %p75, %p76
      %p78 = scmp.ne.s32.totalorder %s69, %s70
      %p79 = scmp.eq.s32.totalorder %s17, 0
      %p80 = por %p78, %p79
      %p81 = scmp.ne.s32.totalorder %s69, %s70
      %p82 = scmp.eq.s32.totalorder %s18, 1
      %p83 = por %p81, %p82
      %p85 = scmp.ne.s32.totalorder %s70, %s84
      %p86 = scmp.eq.s32.totalorder %s18, 0
      %p87 = por %p85, %p86
      %s89 = sadd.s32 %s88, 1
      %p92 = scmp.eq.s32.totalorder %s12, 1
      %p93 = scmp.ne.s32.totalorder %s88, %s90
      %p94 = scmp.eq.s32.totalorder %s12, 0
      %p95 = por %p93, %p94
      %p96 = scmp.ne.s32.totalorder %s88, %s90
      %p97 = scmp.eq.s32.totalorder %s17, 1
      %p98 = por %p96, %p97
      %p99 = scmp.ne.s32.totalorder %s90, %s91
      %p100 = scmp.eq.s32.totalorder %s17, 0
      %p101 = por %p99, %p100
      %p102 = scmp.ne.s32.totalorder %s90, %s91
      %p103 = scmp.eq.s32.totalorder %s18, 1
      %p104 = por %p102, %p103
      %p106 = scmp.ne.s32.totalorder %s91, %s105
      %p107 = scmp.eq.s32.totalorder %s18, 0
      %p108 = por %p106, %p107
      %s110 = sadd.s32 %s109, 1
      %p113 = scmp.eq.s32.totalorder %s12, 1
      %p114 = scmp.ne.s32.totalorder %s109, %s111
      %p115 = scmp.eq.s32.totalorder %s12, 0
      %p116 = por %p114, %p115
      %p117 = scmp.ne.s32.totalorder %s109, %s111
      %p118 = scmp.eq.s32.totalorder %s17, 1
      %p119 = por %p117, %p118
      %p120 = scmp.ne.s32.totalorder %s111, %s112
      %p121 = scmp.eq.s32.totalorder %s17, 0
      %p122 = por %p120, %p121
      %p123 = scmp.ne.s32.totalorder %s111, %s112
      %p124 = scmp.eq.s32.totalorder %s18, 1
      %p125 = por %p123, %p124
      %p127 = scmp.ne.s32.totalorder %s112, %s126
      %p128 = scmp.eq.s32.totalorder %s18, 0
      %p129 = por %p127, %p128
      %s131 = sadd.s32 %s130, 1
      %p134 = scmp.eq.s32.totalorder %s12, 1
      %p135 = scmp.ne.s32.totalorder %s130, %s132
      %p136 = scmp.eq.s32.totalorder %s12, 0
      %p137 = por %p135, %p136
      %p138 = scmp.ne.s32.totalorder %s130, %s132
      %p139 = scmp.eq.s32.totalorder %s17, 1
      %p140 = por %p138, %p139
      %p141 = scmp.ne.s32.totalorder %s132, %s133
      %p142 = scmp.eq.s32.totalorder %s17, 0
      %p143 = por %p141, %p142
      %p144 = scmp.ne.s32.totalorder %s132, %s133
      %p145 = scmp.eq.s32.totalorder %s18, 1
      %p146 = por %p144, %p145
      %p148 = scmp.ne.s32.totalorder %s133, %s147
      %p149 = scmp.eq.s32.totalorder %s18, 0
      %p150 = por %p148, %p149
      %p151 = scmp.le.s32.totalorder 1, %s12
      %p152 = scmp.lt.s32.totalorder %s12, 3
      %p153 = pnand %p151, %p152
      %p154 = pneg %p153
      // Predicated region
      $region9: #{tpu_custom_call.1} parent=5 // pred_check
        _
      $region10: #{tpu_custom_call.1} parent=5 // pred_check_branch
        %156 = sbr.rel (%p153) target = $region12
      $region11: #{tpu_custom_call.1} parent=5 // pred_region
        %s157 = ssub.s32 %s12, 1
        // Predicated region
        $region13: #{tpu_custom_call.1} parent=11 // pred_check
          %p158 = pneg %p59
        $region14: #{tpu_custom_call.1} parent=11 // pred_check_branch
          %160 = sbr.rel (%p158) target = $region16
        $region15: #{tpu_custom_call.1} parent=11 // pred_region
          _
        $region16: #{tpu_custom_call.1} parent=11 // pred_fallthru
          _
        // Predicated region
        $region17: #{tpu_custom_call.1} parent=11 // pred_check
          %p161 = pneg %p80
        $region18: #{tpu_custom_call.1} parent=11 // pred_check_branch
          %163 = sbr.rel (%p161) target = $region20
        $region19: #{tpu_custom_call.1} parent=11 // pred_region
          _
        $region20: #{tpu_custom_call.1} parent=11 // pred_fallthru
          _
        // Predicated region
        $region21: #{tpu_custom_call.1} parent=11 // pred_check
          %p164 = pneg %p101
        $region22: #{tpu_custom_call.1} parent=11 // pred_check_branch
          %166 = sbr.rel (%p164) target = $region24
        $region23: #{tpu_custom_call.1} parent=11 // pred_region
          _
        $region24: #{tpu_custom_call.1} parent=11 // pred_fallthru
          _
        // Predicated region
        $region25: #{tpu_custom_call.1} parent=11 // pred_check
          %p167 = pneg %p122
        $region26: #{tpu_custom_call.1} parent=11 // pred_check_branch
          %169 = sbr.rel (%p167) target = $region28
        $region27: #{tpu_custom_call.1} parent=11 // pred_region
          _
        $region28: #{tpu_custom_call.1} parent=11 // pred_fallthru
          _
      $region12: #{tpu_custom_call.1} parent=5 // pred_fallthru
        _
      %p170 = scmp.lt.s32.totalorder %s12, 2
      // Predicated region
      $region29: #{tpu_custom_call.1} parent=5 // pred_check
        %p171 = pneg %p170
      $region30: #{tpu_custom_call.1} parent=5 // pred_check_branch
        %173 = sbr.rel (%p171) target = $region32
      $region31: #{tpu_custom_call.1} parent=5 // pred_region
        // Predicated region
        $region33: #{tpu_custom_call.1} parent=31 // pred_check
          %p174 = pneg %p32
        $region34: #{tpu_custom_call.1} parent=31 // pred_check_branch
          %176 = sbr.rel (%p174) target = $region36
        $region35: #{tpu_custom_call.1} parent=31 // pred_region
          %p177 = scmp.lt.s32.totalorder %s12, 1
          %s178 = scalar_select %p177, %s12, 1
          %s179 = smul.addr %s178, 32
          %s180 = smul.addr %s179, 8
          %s181 = scalar_lea.vmem %s0, %s180
        $region36: #{tpu_custom_call.1} parent=31 // pred_fallthru
          _
      $region32: #{tpu_custom_call.1} parent=5 // pred_fallthru
        _
      %p182 = scmp.le.s32.totalorder 1, %s12
      %p183 = scmp.lt.s32.totalorder %s12, 3
      %p184 = pnand %p182, %p183
      %p185 = pneg %p184
      // Predicated region
      $region37: #{tpu_custom_call.1} parent=5 // pred_check
        _
      $region38: #{tpu_custom_call.1} parent=5 // pred_check_branch
        %187 = sbr.rel (%p184) target = $region40
      $region39: #{tpu_custom_call.1} parent=5 // pred_region
        %s188 = ssub.s32 %s12, 1
        %p189 = scmp.lt.s32.totalorder %s17, 1
        %s190 = scalar_select %p189, %s17, 1
        %s191 = smul.addr %s190, 32
        %s192 = smul.addr %s191, 8
        %s193 = scalar_lea.vmem %s0, %s192
        %p194 = pneg %p38
        %p195 = pneg %p35
        %p196 = pneg %p59
        %p197 = pneg %p56
        %p198 = pneg %p80
        %p199 = pneg %p77
        %p200 = pneg %p101
        %p201 = pneg %p98
        %p202 = pneg %p122
        %p203 = pneg %p119
        %p204 = pneg %p143
        %p205 = pneg %p140
        %p206 = scmp.lt.s32.totalorder %s17, 1
        %s207 = scalar_select %p206, %s17, 1
        %s208 = smul.addr %s207, 32
        %s209 = smul.addr %s208, 8
        %s210 = scalar_lea.vmem %s0, %s209
        %v212 = vld [vmem:[%s210] sm:$0xff]
        %v213 = vld [vmem:[%s210 + $0x8] sm:$0xff]
        %v214 = vld [vmem:[%s210 + $0x10] sm:$0xff]
        %v215 = vld [vmem:[%s210 + $0x18] sm:$0xff]
        %v216 = vld [vmem:[%s210 + $0x20] sm:$0xff]
        %v217 = vld [vmem:[%s210 + $0x28] sm:$0xff]
        %v218 = vld [vmem:[%s210 + $0x30] sm:$0xff]
        %v219 = vld [vmem:[%s210 + $0x38] sm:$0xff]
        %v220 = vld [vmem:[%s210 + $0x40] sm:$0xff]
        %v221 = vld [vmem:[%s210 + $0x48] sm:$0xff]
        %v222 = vld [vmem:[%s210 + $0x50] sm:$0xff]
        %v223 = vld [vmem:[%s210 + $0x58] sm:$0xff]
        %v224 = vld [vmem:[%s210 + $0x60] sm:$0xff]
        %v225 = vld [vmem:[%s210 + $0x68] sm:$0xff]
        %v226 = vld [vmem:[%s210 + $0x70] sm:$0xff]
        %v227 = vld [vmem:[%s210 + $0x78] sm:$0xff]
        %v228 = vld [vmem:[%s210 + $0x80] sm:$0xff]
        %v229 = vld [vmem:[%s210 + $0x88] sm:$0xff]
        %v230 = vld [vmem:[%s210 + $0x90] sm:$0xff]
        %v231 = vld [vmem:[%s210 + $0x98] sm:$0xff]
        %v232 = vld [vmem:[%s210 + $0xa0] sm:$0xff]
        %v233 = vld [vmem:[%s210 + $0xa8] sm:$0xff]
        %v234 = vld [vmem:[%s210 + $0xb0] sm:$0xff]
        %v235 = vld [vmem:[%s210 + $0xb8] sm:$0xff]
        %v236 = vld [vmem:[%s210 + $0xc0] sm:$0xff]
        %v237 = vld [vmem:[%s210 + $0xc8] sm:$0xff]
        %v238 = vld [vmem:[%s210 + $0xd0] sm:$0xff]
        %v239 = vld [vmem:[%s210 + $0xd8] sm:$0xff]
        %v240 = vld [vmem:[%s210 + $0xe0] sm:$0xff]
        %v241 = vld [vmem:[%s210 + $0xe8] sm:$0xff]
        %v242 = vld [vmem:[%s210 + $0xf0] sm:$0xff]
        %v243 = vld [vmem:[%s210 + $0xf8] sm:$0xff]
        %v244 = vpack.c.bf16 %v213, %v212
        %v245 = vpack.c.bf16 %v215, %v214
        %v246 = vpack.c.bf16 %v217, %v216
        %v247 = vpack.c.bf16 %v219, %v218
        %v248 = vpack.c.bf16 %v221, %v220
        %v249 = vpack.c.bf16 %v223, %v222
        %v250 = vpack.c.bf16 %v225, %v224
        %v251 = vpack.c.bf16 %v227, %v226
        %v252 = vpack.c.bf16 %v229, %v228
        %v253 = vpack.c.bf16 %v231, %v230
        %v254 = vpack.c.bf16 %v233, %v232
        %v255 = vpack.c.bf16 %v235, %v234
        %v256 = vpack.c.bf16 %v237, %v236
        %v257 = vpack.c.bf16 %v239, %v238
        %v258 = vpack.c.bf16 %v241, %v240
        %v259 = vpack.c.bf16 %v243, %v242
        %v260 = vld [vmem:[%s1] sm:$0xff]
        %v261 = vld [vmem:[%s1 + $0x8] sm:$0xff]
        %v262 = vld [vmem:[%s1 + $0x10] sm:$0xff]
        %v263 = vld [vmem:[%s1 + $0x18] sm:$0xff]
        %v264 = vld [vmem:[%s2] sm:$0xff]
        %v265 = vld [vmem:[%s2 + $0x8] sm:$0xff]
        %v266 = vld [vmem:[%s2 + $0x10] sm:$0xff]
        %v267 = vld [vmem:[%s2 + $0x18] sm:$0xff]
        %269 = vset.pattern.permute.xlu0 0
        %270 = vperm.xlu0 %269, %v264
        %v271 = vpop.permute.xlu0 %270
        %274 = vset.pattern.permute.xlu0 0
        %275 = vperm.xlu0 %274, %v265
        %v276 = vpop.permute.xlu0 %275
        %279 = vset.pattern.permute.xlu0 0
        %280 = vperm.xlu0 %279, %v266
        %v281 = vpop.permute.xlu0 %280
        %284 = vset.pattern.permute.xlu0 0
        %285 = vperm.xlu0 %284, %v267
        %v286 = vpop.permute.xlu0 %285
        %v292 = vunpack.c.l.b16 %v260
        %v293 = vunpack.c.h.b16 %v260
        %v294 = vunpack.c.l.b16 %v261
        %v295 = vunpack.c.h.b16 %v261
        %v296 = vunpack.c.l.b16 %v262
        %v297 = vunpack.c.h.b16 %v262
        %v298 = vunpack.c.l.b16 %v263
        %v299 = vunpack.c.h.b16 %v263
        %v300 = vpack.c.b16 %v294, %v292
        %v301 = vpack.c.b16 %v295, %v293
        %v302 = vpack.c.b16 %v298, %v296
        %v303 = vpack.c.b16 %v299, %v297
        %308 = vmatpush.bf16.msra.mxu0 %v251
        %309 = vmatpush.bf16.msra.mxu0 %v250
        %310 = vmatpush.bf16.msra.mxu0 %v249
        %311 = vmatpush.bf16.msra.mxu0 %v248
        %312 = vmatpush.bf16.msra.mxu0 %v247
        %313 = vmatpush.bf16.msra.mxu0 %v246
        %314 = vmatpush.bf16.msra.mxu0 %v245
        %315 = vmatpush.bf16.msra.mxu0 %v244
        %316 = vmatmul.bf16.gmra.mxu0 %v300
        %v317 = vpop.f32.mrf.mxu0
        %v318 = vadd.f32 %v271, %v317
        %v319 = vpop.f32.mrf.mxu0
        %v320 = vadd.f32 %v276, %v319
        %321 = vmatmul.bf16.gmra.mxu0 %v302
        %v322 = vpop.f32.mrf.mxu0
        %v323 = vadd.f32 %v281, %v322
        %v324 = vpop.f32.mrf.mxu0
        %v325 = vadd.f32 %v286, %v324
        %326 = vdwg.mxu0
        %327 = vmatpush.bf16.msra.mxu0 %v259
        %328 = vmatpush.bf16.msra.mxu0 %v258
        %329 = vmatpush.bf16.msra.mxu0 %v257
        %330 = vmatpush.bf16.msra.mxu0 %v256
        %331 = vmatpush.bf16.msra.mxu0 %v255
        %332 = vmatpush.bf16.msra.mxu0 %v254
        %333 = vmatpush.bf16.msra.mxu0 %v253
        %334 = vmatpush.bf16.msra.mxu0 %v252
        %335 = vmatmul.bf16.gmra.mxu0 %v301
        %v336 = vpop.f32.mrf.mxu0
        %v337 = vadd.f32 %v318, %v336
        %v338 = vpop.f32.mrf.mxu0
        %v339 = vadd.f32 %v320, %v338
        %340 = vmatmul.bf16.gmra.mxu0 %v303
        %v341 = vpop.f32.mrf.mxu0
        %v342 = vadd.f32 %v323, %v341
        %v343 = vpop.f32.mrf.mxu0
        %v344 = vadd.f32 %v325, %v343
        %345 = vdwg.mxu0
        %v346 = vmax.f32 %v337, 0.0
        %v347 = vmax.f32 %v339, 0.0
        %v348 = vmax.f32 %v342, 0.0
        %v349 = vmax.f32 %v344, 0.0
        %v350 = vld [vmem:[%s3] sm:$0xf]
        %v351 = vpack.c.bf16 %v347, %v346
        %v352 = vpack.c.bf16 %v349, %v348
        %v353 = vld [vmem:[%s4] sm:$0xff]
        %355 = vset.pattern.permute.xlu0 0
        %356 = vperm.xlu0 %355, %v353
        %v357 = vpop.permute.xlu0 %356
        %vm359 = vcmask 261120
        %v361 = vsel %vm359, %v350, 0
        %363 = vmatpush.bf16.msra.mxu0 0
        %364 = vmatpush.bf16.msra.mxu0 0
        %365 = vmatpush.bf16.msra.mxu0 0
        %366 = vmatpush.bf16.msra.mxu0 0
        %367 = vmatpush.bf16.msra.mxu0 0
        %368 = vmatpush.bf16.msra.mxu0 0
        %369 = vmatpush.bf16.msra.mxu0 %v352
        %370 = vmatpush.bf16.msra.mxu0 %v351
        %371 = vmatmul.bf16.gmra.mxu0 %v361
        %v372 = vpop.f32.mrf.mxu0
        %v373 = vadd.f32 %v357, %v372
        %v374 = vpop.f32.mrf.mxu0
        %375 = vdwg.mxu0
        %p376 = scmp.eq.s32.totalorder %s17, 0
        // Predicated region
        $region41: #{tpu_custom_call.1} parent=39 // pred_check
          %p377 = pneg %p376
        $region42: #{tpu_custom_call.1} parent=39 // pred_check_branch
          %379 = sbr.rel (%p377) target = $region44
        $region43: #{tpu_custom_call.1} parent=39 // pred_region
          %vm380 = vcmask 523264
          %381 = vst.msk [vmem:[#allocation2] sm:$0xff] %vm380, 0.0
        $region44: #{tpu_custom_call.1} parent=39 // pred_fallthru
          _
        %v382 = vld [vmem:[#allocation2] sm:$0xff]
        %v383 = vadd.f32 %v382, %v373
        %vm384 = vcmask 523264
        %385 = vst.msk [vmem:[#allocation2] sm:$0xff] %vm384, %v383
        %p386 = scmp.eq.s32.totalorder %s17, 1
        // Predicated region
        $region45: #{tpu_custom_call.1} parent=39 // pred_check
          %p387 = pneg %p386
        $region46: #{tpu_custom_call.1} parent=39 // pred_check_branch
          %389 = sbr.rel (%p387) target = $region48
        $region47: #{tpu_custom_call.1} parent=39 // pred_region
          %v390 = vld [vmem:[#allocation2] sm:$0xff]
          %v391 = vrcp.pop 2.0
          %v392 = vmul.f32 2.0, %v391
          %v393 = vsub.f32 1.0, %v392
          %v394 = vmul.f32 %v391, %v393
          %v395 = vadd.f32 %v391, %v394
          %vm396 = vweird.f32 %v391
          %v397 = vsel %vm396, %v391, %v395
          %v398 = vmul.f32 %v390, %v397
          %399 = vst.msk [vmem:[#allocation2] sm:$0xff] %vm384, %v398
        $region48: #{tpu_custom_call.1} parent=39 // pred_fallthru
          _
        // Predicated region
        $region49: #{tpu_custom_call.1} parent=39 // pred_check
          %p400 = pneg %p140
        $region50: #{tpu_custom_call.1} parent=39 // pred_check_branch
          %402 = sbr.rel (%p400) target = $region52
        $region51: #{tpu_custom_call.1} parent=39 // pred_region
          %404 = vsyncadd [#allocation3], 0
          %s406 = sshll.u32 [#allocation2], 4
          %s407 = int_to_ptr.vmem [resolvable:$true] %s406
          %s408 = sshll.u32 %s5, 4
          %s409 = int_to_ptr.hbm [resolvable:$true] %s408
          %411 = dma.vmem_to_hbm [thread:$0]  %s407, 128, %s409, [#allocation3]
        $region52: #{tpu_custom_call.1} parent=39 // pred_fallthru
          _
        // Predicated region
        $region53: #{tpu_custom_call.1} parent=39 // pred_check
          %p412 = pneg %p140
        $region54: #{tpu_custom_call.1} parent=39 // pred_check_branch
          %414 = sbr.rel (%p412) target = $region56
        $region55: #{tpu_custom_call.1} parent=39 // pred_region
          %416 = dma.done [#allocation3], 128
        $region56: #{tpu_custom_call.1} parent=39 // pred_fallthru
          _
      $region40: #{tpu_custom_call.1} parent=5 // pred_fallthru
        _
      %p417 = scmp.le.s32.totalorder 2, %s12
      // Predicated region
      $region57: #{tpu_custom_call.1} parent=5 // pred_check
        %p418 = pneg %p417
      $region58: #{tpu_custom_call.1} parent=5 // pred_check_branch
        %420 = sbr.rel (%p418) target = $region60
      $region59: #{tpu_custom_call.1} parent=5 // pred_region
        %s421 = ssub.s32 %s12, 2
      $region60: #{tpu_custom_call.1} parent=5 // pred_fallthru
        _
    $region6: #{tpu_custom_call.1} parent=1 // loop_footer
      %s16 = sadd.s32 1, %s12
    $region7: #{tpu_custom_call.1} parent=1 // loop_footer_branch
      %11 = sbr.rel target = $region3
    $region8: #{tpu_custom_call.1} parent=1 // loop_exit
      _
    %422 = vsyncpa [#allocation3], 1
    %s423 = scalar_lea.sflag [#allocation3], 1
    %424 = vsyncpa %s423, 1

</llo_original>
